<compile_context>
chip_gen: v6e
topology: v6e:2x2x1
jax: 0.10.0
libtpu: 0.0.40
codegen_flags: <defaults>
</compile_context>

<pallas_src>
import jax
import jax.numpy as jnp
from jax import lax
from jax.experimental import pallas as pl
from jax.experimental.pallas import tpu as pltpu

KS = 7   # spatial-attention kernel size
PAD = 3  # padding for kernel_size=7


def _cbam_kernel(x_ref, w1_ref, w2_ref, msa_ref, res_ref, sa_ref):
    # x_ref:   (Bt, C, HW)  VMEM -- sub-batch, lane-dense spatial dim
    # w1_ref:  (Cr, C)      VMEM -- fc1 1x1-conv weight
    # w2_ref:  (C, Cr)      VMEM -- fc2 1x1-conv weight
    # msa_ref: (2*HW, HW)   VMEM -- 7x7 conv lowered to a dense matrix
    # res_ref: (Bt, C, HW)  out  -- x * ca * sa
    # sa_ref:  (Bt, 1, HW)  out  -- spatial attention map (lane-dense)
    bt, c, hw = x_ref.shape
    inv_hw = 1.0 / float(hw)
    inv_c = 1.0 / float(c)

    xb = [x_ref[b] for b in range(bt)]                        # Bt x (C, HW)

    # ---------------- Channel attention (batched MLP) ----------------
    # TODO(synk): for large C*HW, compute the avg pool as an MXU matmul
    # (x2 @ ones(HW,1)) so the lane-axis sum does not contend with the XLU.
    cols = [jnp.sum(xb[b], axis=1, keepdims=True) * inv_hw for b in range(bt)]
    cols += [jnp.max(xb[b], axis=1, keepdims=True) for b in range(bt)]
    pooled = jnp.concatenate(cols, axis=1)                    # (C, 2*Bt)

    h = jnp.maximum(
        jnp.dot(w1_ref[...], pooled, preferred_element_type=jnp.float32),
        0.0)                                                  # (Cr, 2*Bt)
    # dot is linear: w2 @ h_avg + w2 @ h_max == w2 @ (h_avg + h_max)
    ca = jax.nn.sigmoid(
        jnp.dot(w2_ref[...], h[:, :bt] + h[:, bt:],
                preferred_element_type=jnp.float32))          # (C, Bt)

    # ---------------- Spatial attention ----------------
    outb = []
    rows = []
    for b in range(bt):
        ob = xb[b] * ca[:, b:b + 1]                           # (C, HW)
        outb.append(ob)
        avg_r = jnp.sum(ob, axis=0, keepdims=True) * inv_c    # (1, HW)
        max_r = jnp.max(ob, axis=0, keepdims=True)            # (1, HW)
        rows.append(jnp.concatenate([avg_r, max_r], axis=1))  # (1, 2*HW)
    cat = jnp.concatenate(rows, axis=0)                       # (Bt, 2*HW)

    # Entire 7x7 conv (both channels, zero-padding baked in) as one matmul.
    sa = jax.nn.sigmoid(
        jnp.dot(cat, msa_ref[...],
                preferred_element_type=jnp.float32))          # (Bt, HW)

    for b in range(bt):
        res_ref[b] = outb[b] * sa[b:b + 1, :]                 # (C, HW)
        sa_ref[b] = sa[b:b + 1, :]                            # (1, HW)


def _conv7x7_as_matrix(wsa, H, W):
    """Lower the (2, KS, KS) conv (padding=PAD, cross-correlation) to a dense
    (2*H*W, H*W) matrix M such that  conv(avg, max) == [avg_flat|max_flat] @ M.
    Built in the wrapper (plain XLA), consumed by the kernel on the MXU."""
    hw = H * W
    idx = jnp.arange(hw)
    iy, ix = idx // W, idx % W
    # rows of M index the input position, columns index the output position
    dy = iy[:, None] - iy[None, :] + PAD
    dx = ix[:, None] - ix[None, :] + PAD
    valid = (dy >= 0) & (dy < KS) & (dx >= 0) & (dx < KS)
    dyc = jnp.clip(dy, 0, KS - 1)
    dxc = jnp.clip(dx, 0, KS - 1)
    m_avg = jnp.where(valid, wsa[0][dyc, dxc], 0.0)
    m_max = jnp.where(valid, wsa[1][dyc, dxc], 0.0)
    return jnp.concatenate([m_avg, m_max], axis=0).astype(jnp.float32)


def cbam_pallas(x, w1, w2, wsa):
    """x: (B, C, H, W) f32. w1: (C//r, C). w2: (C, C//r). wsa: (2, KS, KS)."""
    B, C, H, W = x.shape
    Cr = w1.shape[0]
    HW = H * W

    # Sub-batch size: ~2 MiB input slabs, but keep >=2 grid steps when B >= 2
    # so v7x's two TensorCores both get work.
    bytes_per_elem = C * HW * 4
    bt = max(1, (2 << 20) // bytes_per_elem)
    if B >= 2:
        bt = min(bt, pl.cdiv(B, 2))
    bt = min(bt, B)
    n_steps = pl.cdiv(B, bt)
    Bp = n_steps * bt

    x_flat = x.reshape(B, C, HW).astype(jnp.float32)
    if Bp != B:
        x_flat = jnp.concatenate(
            [x_flat, jnp.zeros((Bp - B, C, HW), jnp.float32)], axis=0)

    msa = _conv7x7_as_matrix(wsa.astype(jnp.float32), H, W)   # (2*HW, HW)

    # TODO(synk): for large H*W the dense (2*HW, HW) conv matrix is O(HW^2);
    # switch to per-dy (W+2*PAD, W) banded matmuls, and add a channel-tiled
    # two-pass path (partial spatial avg/max in VMEM scratch) for v7x's
    # 64 MiB VMEM at production C / feature-map sizes.
    res_flat, sa_flat = pl.pallas_call(
        _cbam_kernel,
        out_shape=(
            jax.ShapeDtypeStruct((Bp, C, HW), jnp.float32),
            jax.ShapeDtypeStruct((Bp, 1, HW), jnp.float32),
        ),
        grid=(n_steps,),
        in_specs=[
            pl.BlockSpec((bt, C, HW), lambda i: (i, 0, 0)),
            pl.BlockSpec((Cr, C), lambda i: (0, 0)),
            pl.BlockSpec((C, Cr), lambda i: (0, 0)),
            pl.BlockSpec((2 * HW, HW), lambda i: (0, 0)),
        ],
        out_specs=(
            pl.BlockSpec((bt, C, HW), lambda i: (i, 0, 0)),
            pl.BlockSpec((bt, 1, HW), lambda i: (i, 0, 0)),
        ),
        compiler_params=pltpu.CompilerParams(
            dimension_semantics=("parallel",)),
    )(x_flat, w1.astype(jnp.float32), w2.astype(jnp.float32), msa)

    res = res_flat[:B].reshape(B, C, H, W)
    sa = sa_flat[:B].reshape(B, 1, H, W)
    return res, sa


def cbam_reference(x, w1, w2, wsa):
    """Pure-JAX reference mirroring the PyTorch forward."""
    avg = jnp.mean(x, axis=(2, 3))                          # (B, C)
    mx = jnp.max(x, axis=(2, 3))                            # (B, C)
    avg_out = jnp.maximum(avg @ w1.T, 0.0) @ w2.T           # (B, C)
    max_out = jnp.maximum(mx @ w1.T, 0.0) @ w2.T            # (B, C)
    ca = jax.nn.sigmoid(avg_out + max_out)[:, :, None, None]
    out = x * ca
    savg = jnp.mean(out, axis=1, keepdims=True)             # (B,1,H,W)
    smax = jnp.max(out, axis=1, keepdims=True)              # (B,1,H,W)
    cat = jnp.concatenate([savg, smax], axis=1)             # (B,2,H,W)
    conv = lax.conv_general_dilated(
        cat, wsa.reshape(1, 2, KS, KS), window_strides=(1, 1),
        padding=((PAD, PAD), (PAD, PAD)),
        dimension_numbers=("NCHW", "OIHW", "NCHW"))
    sa = jax.nn.sigmoid(conv)                               # (B,1,H,W)
    return out * sa, sa


if __name__ == "__main__":
    B, C, H, W = 4, 32, 16, 16
    ratio = 16
    Cr = C // ratio

    key = jax.random.PRNGKey(0)
    kx, k1, k2, k3 = jax.random.split(key, 4)
    x = jax.random.normal(kx, (B, C, H, W), dtype=jnp.float32)
    w1 = jax.random.normal(k1, (Cr, C), dtype=jnp.float32) * 0.1       # fc1
    w2 = jax.random.normal(k2, (C, Cr), dtype=jnp.float32) * 0.1       # fc2
    wsa = jax.random.normal(k3, (2, KS, KS), dtype=jnp.float32) * 0.1  # 7x7 conv

    result, attn_sa = jax.block_until_ready(cbam_pallas(x, w1, w2, wsa))

    ref_result, ref_sa = cbam_reference(x, w1, w2, wsa)
    assert result.shape == (B, C, H, W) and attn_sa.shape == (B, 1, H, W)
    assert jnp.allclose(result, ref_result, atol=1e-4, rtol=1e-4)
    assert jnp.allclose(attn_sa, ref_sa, atol=1e-4, rtol=1e-4)

    print("KERNEL_OK")
</pallas_src>

<mosaic_0001>
module attributes {stable_mosaic.version = 11 : i64} {
  func.func @_cbam_kernel(%arg0: i32, %arg1: memref<2x32x256xf32, #tpu.memory_space<vmem>>, %arg2: memref<2x32xf32, #tpu.memory_space<vmem>>, %arg3: memref<32x2xf32, #tpu.memory_space<vmem>>, %arg4: memref<512x256xf32, #tpu.memory_space<vmem>>, %arg5: memref<2x32x256xf32, #tpu.memory_space<vmem>>, %arg6: memref<2x1x256xf32, #tpu.memory_space<vmem>>) attributes {dimension_semantics = [#tpu.dimension_semantics<parallel>], iteration_bounds = array<i64: 2>, scalar_prefetch = 0 : i64, scratch_operands = 0 : i64, tpu.core_type = #tpu.core_type<tc>, window_params = [{transform_indices = @transform_0, window_bounds = array<i64: 2, 32, 256>}, {pipeline_mode = #tpu.pipeline_mode<synchronous>, transform_indices = @transform_1, window_bounds = array<i64: 2, 32>}, {pipeline_mode = #tpu.pipeline_mode<synchronous>, transform_indices = @transform_2, window_bounds = array<i64: 32, 2>}, {pipeline_mode = #tpu.pipeline_mode<synchronous>, transform_indices = @transform_3, window_bounds = array<i64: 512, 256>}, {transform_indices = @transform_4, window_bounds = array<i64: 2, 32, 256>}, {transform_indices = @transform_5, window_bounds = array<i64: 2, 1, 256>}]} {
    %c0 = arith.constant 0 : index
    %c0_0 = arith.constant 0 : index
    %c0_1 = arith.constant 0 : index
    %0 = vector.load %arg1[%c0, %c0_0, %c0_1] : memref<2x32x256xf32, #tpu.memory_space<vmem>>, vector<1x32x256xf32>
    %1 = vector.shape_cast %0 : vector<1x32x256xf32> to vector<32x256xf32>
    %c1 = arith.constant 1 : index
    %c0_2 = arith.constant 0 : index
    %c0_3 = arith.constant 0 : index
    %2 = vector.load %arg1[%c1, %c0_2, %c0_3] : memref<2x32x256xf32, #tpu.memory_space<vmem>>, vector<1x32x256xf32>
    %3 = vector.shape_cast %2 : vector<1x32x256xf32> to vector<32x256xf32>
    %cst = arith.constant dense<0.000000e+00> : vector<32xf32>
    %4 = vector.multi_reduction <add>, %1, %cst [1] : vector<32x256xf32> to vector<32xf32>
    %5 = vector.shape_cast %4 : vector<32xf32> to vector<32x1xf32>
    %cst_4 = arith.constant 3.906250e-03 : f32
    %6 = vector.broadcast %cst_4 : f32 to vector<32x1xf32>
    %7 = arith.mulf %5, %6 : vector<32x1xf32>
    %cst_5 = arith.constant dense<0.000000e+00> : vector<32xf32>
    %8 = vector.multi_reduction <add>, %3, %cst_5 [1] : vector<32x256xf32> to vector<32xf32>
    %9 = vector.shape_cast %8 : vector<32xf32> to vector<32x1xf32>
    %cst_6 = arith.constant 3.906250e-03 : f32
    %10 = vector.broadcast %cst_6 : f32 to vector<32x1xf32>
    %11 = arith.mulf %9, %10 : vector<32x1xf32>
    %cst_7 = arith.constant dense<0xFF800000> : vector<32xf32>
    %12 = vector.multi_reduction <maximumf>, %1, %cst_7 [1] : vector<32x256xf32> to vector<32xf32>
    %13 = vector.shape_cast %12 : vector<32xf32> to vector<32x1xf32>
    %cst_8 = arith.constant dense<0xFF800000> : vector<32xf32>
    %14 = vector.multi_reduction <maximumf>, %3, %cst_8 [1] : vector<32x256xf32> to vector<32xf32>
    %15 = vector.shape_cast %14 : vector<32xf32> to vector<32x1xf32>
    %16 = tpu.concatenate %7, %11, %13, %15 in 1 : vector<32x1xf32>, vector<32x1xf32>, vector<32x1xf32>, vector<32x1xf32> -> vector<32x4xf32>
    %c0_9 = arith.constant 0 : index
    %c0_10 = arith.constant 0 : index
    %17 = vector.load %arg2[%c0_9, %c0_10] : memref<2x32xf32, #tpu.memory_space<vmem>>, vector<2x32xf32>
    %cst_11 = arith.constant dense<0.000000e+00> : vector<2x4xf32>
    %18 = tpu.matmul %17, %16, %cst_11 {dimension_numbers = #tpu.dot_dimension_numbers<[1], [0], [0], [1], [0, 0, 1, 1], [], []>} : vector<2x32xf32>, vector<32x4xf32>, vector<2x4xf32> -> vector<2x4xf32>
    %cst_12 = arith.constant 0.000000e+00 : f32
    %19 = vector.broadcast %cst_12 : f32 to vector<2x4xf32>
    %20 = arith.maximumf %18, %19 : vector<2x4xf32>
    %c0_13 = arith.constant 0 : index
    %c0_14 = arith.constant 0 : index
    %21 = vector.load %arg3[%c0_13, %c0_14] : memref<32x2xf32, #tpu.memory_space<vmem>>, vector<32x2xf32>
    %22 = vector.extract_strided_slice %20 {offsets = [0, 0], sizes = [2, 2], strides = [1, 1]} : vector<2x4xf32> to vector<2x2xf32>
    %23 = vector.extract_strided_slice %20 {offsets = [0, 2], sizes = [2, 2], strides = [1, 1]} : vector<2x4xf32> to vector<2x2xf32>
    %24 = arith.addf %22, %23 : vector<2x2xf32>
    %cst_15 = arith.constant dense<0.000000e+00> : vector<32x2xf32>
    %25 = tpu.matmul %21, %24, %cst_15 {dimension_numbers = #tpu.dot_dimension_numbers<[1], [0], [0], [1], [0, 0, 1, 1], [], []>} : vector<32x2xf32>, vector<2x2xf32>, vector<32x2xf32> -> vector<32x2xf32>
    %26 = arith.negf %25 : vector<32x2xf32>
    %27 = math.exp %26 : vector<32x2xf32>
    %cst_16 = arith.constant 1.000000e+00 : f32
    %28 = vector.broadcast %cst_16 : f32 to vector<32x2xf32>
    %29 = arith.addf %28, %27 : vector<32x2xf32>
    %30 = arith.divf %28, %29 : vector<32x2xf32>
    %31 = vector.extract_strided_slice %30 {offsets = [0, 0], sizes = [32, 1], strides = [1, 1]} : vector<32x2xf32> to vector<32x1xf32>
    %32 = vector.broadcast %31 : vector<32x1xf32> to vector<32x256xf32>
    %33 = arith.mulf %1, %32 : vector<32x256xf32>
    %cst_17 = arith.constant dense<0.000000e+00> : vector<256xf32>
    %34 = vector.multi_reduction <add>, %33, %cst_17 [0] : vector<32x256xf32> to vector<256xf32>
    %35 = vector.shape_cast %34 : vector<256xf32> to vector<1x256xf32>
    %cst_18 = arith.constant 3.125000e-02 : f32
    %36 = vector.broadcast %cst_18 : f32 to vector<1x256xf32>
    %37 = arith.mulf %35, %36 : vector<1x256xf32>
    %cst_19 = arith.constant dense<0xFF800000> : vector<256xf32>
    %38 = vector.multi_reduction <maximumf>, %33, %cst_19 [0] : vector<32x256xf32> to vector<256xf32>
    %39 = vector.shape_cast %38 : vector<256xf32> to vector<1x256xf32>
    %40 = tpu.concatenate %37, %39 in 1 : vector<1x256xf32>, vector<1x256xf32> -> vector<1x512xf32>
    %41 = vector.extract_strided_slice %30 {offsets = [0, 1], sizes = [32, 1], strides = [1, 1]} : vector<32x2xf32> to vector<32x1xf32>
    %42 = vector.broadcast %41 : vector<32x1xf32> to vector<32x256xf32>
    %43 = arith.mulf %3, %42 : vector<32x256xf32>
    %cst_20 = arith.constant dense<0.000000e+00> : vector<256xf32>
    %44 = vector.multi_reduction <add>, %43, %cst_20 [0] : vector<32x256xf32> to vector<256xf32>
    %45 = vector.shape_cast %44 : vector<256xf32> to vector<1x256xf32>
    %cst_21 = arith.constant 3.125000e-02 : f32
    %46 = vector.broadcast %cst_21 : f32 to vector<1x256xf32>
    %47 = arith.mulf %45, %46 : vector<1x256xf32>
    %cst_22 = arith.constant dense<0xFF800000> : vector<256xf32>
    %48 = vector.multi_reduction <maximumf>, %43, %cst_22 [0] : vector<32x256xf32> to vector<256xf32>
    %49 = vector.shape_cast %48 : vector<256xf32> to vector<1x256xf32>
    %50 = tpu.concatenate %47, %49 in 1 : vector<1x256xf32>, vector<1x256xf32> -> vector<1x512xf32>
    %51 = tpu.concatenate %40, %50 in 0 : vector<1x512xf32>, vector<1x512xf32> -> vector<2x512xf32>
    %c0_23 = arith.constant 0 : index
    %c0_24 = arith.constant 0 : index
    %52 = vector.load %arg4[%c0_23, %c0_24] : memref<512x256xf32, #tpu.memory_space<vmem>>, vector<512x256xf32>
    %cst_25 = arith.constant dense<0.000000e+00> : vector<2x256xf32>
    %53 = tpu.matmul %51, %52, %cst_25 {dimension_numbers = #tpu.dot_dimension_numbers<[1], [0], [0], [1], [0, 0, 1, 1], [], []>} : vector<2x512xf32>, vector<512x256xf32>, vector<2x256xf32> -> vector<2x256xf32>
    %54 = arith.negf %53 : vector<2x256xf32>
    %55 = math.exp %54 : vector<2x256xf32>
    %cst_26 = arith.constant 1.000000e+00 : f32
    %56 = vector.broadcast %cst_26 : f32 to vector<2x256xf32>
    %57 = arith.addf %56, %55 : vector<2x256xf32>
    %58 = arith.divf %56, %57 : vector<2x256xf32>
    %59 = vector.extract_strided_slice %58 {offsets = [0, 0], sizes = [1, 256], strides = [1, 1]} : vector<2x256xf32> to vector<1x256xf32>
    %60 = vector.broadcast %59 : vector<1x256xf32> to vector<32x256xf32>
    %61 = arith.mulf %33, %60 : vector<32x256xf32>
    %c0_27 = arith.constant 0 : index
    %c0_28 = arith.constant 0 : index
    %c0_29 = arith.constant 0 : index
    %62 = vector.load %arg5[%c0_27, %c0_28, %c0_29] : memref<2x32x256xf32, #tpu.memory_space<vmem>>, vector<1x32x256xf32>
    %63 = vector.shape_cast %62 : vector<1x32x256xf32> to vector<32x256xf32>
    %64 = vector.shape_cast %61 : vector<32x256xf32> to vector<1x32x256xf32>
    tpu.vector_store %arg5[%c0_27, %c0_28, %c0_29], %64 {strides = array<i32>} : memref<2x32x256xf32, #tpu.memory_space<vmem>>, vector<1x32x256xf32>,
    %65 = vector.extract_strided_slice %58 {offsets = [0, 0], sizes = [1, 256], strides = [1, 1]} : vector<2x256xf32> to vector<1x256xf32>
    %c0_30 = arith.constant 0 : index
    %c0_31 = arith.constant 0 : index
    %c0_32 = arith.constant 0 : index
    %66 = vector.load %arg6[%c0_30, %c0_31, %c0_32] : memref<2x1x256xf32, #tpu.memory_space<vmem>>, vector<1x1x256xf32>
    %67 = vector.shape_cast %66 : vector<1x1x256xf32> to vector<1x256xf32>
    %68 = vector.shape_cast %65 : vector<1x256xf32> to vector<1x1x256xf32>
    tpu.vector_store %arg6[%c0_30, %c0_31, %c0_32], %68 {strides = array<i32>} : memref<2x1x256xf32, #tpu.memory_space<vmem>>, vector<1x1x256xf32>,
    %69 = vector.extract_strided_slice %58 {offsets = [1, 0], sizes = [1, 256], strides = [1, 1]} : vector<2x256xf32> to vector<1x256xf32>
    %70 = vector.broadcast %69 : vector<1x256xf32> to vector<32x256xf32>
    %71 = arith.mulf %43, %70 : vector<32x256xf32>
    %c1_33 = arith.constant 1 : index
    %c0_34 = arith.constant 0 : index
    %c0_35 = arith.constant 0 : index
    %72 = vector.load %arg5[%c1_33, %c0_34, %c0_35] : memref<2x32x256xf32, #tpu.memory_space<vmem>>, vector<1x32x256xf32>
    %73 = vector.shape_cast %72 : vector<1x32x256xf32> to vector<32x256xf32>
    %74 = vector.shape_cast %71 : vector<32x256xf32> to vector<1x32x256xf32>
    tpu.vector_store %arg5[%c1_33, %c0_34, %c0_35], %74 {strides = array<i32>} : memref<2x32x256xf32, #tpu.memory_space<vmem>>, vector<1x32x256xf32>,
    %75 = vector.extract_strided_slice %58 {offsets = [1, 0], sizes = [1, 256], strides = [1, 1]} : vector<2x256xf32> to vector<1x256xf32>
    %c1_36 = arith.constant 1 : index
    %c0_37 = arith.constant 0 : index
    %c0_38 = arith.constant 0 : index
    %76 = vector.load %arg6[%c1_36, %c0_37, %c0_38] : memref<2x1x256xf32, #tpu.memory_space<vmem>>, vector<1x1x256xf32>
    %77 = vector.shape_cast %76 : vector<1x1x256xf32> to vector<1x256xf32>
    %78 = vector.shape_cast %75 : vector<1x256xf32> to vector<1x1x256xf32>
    tpu.vector_store %arg6[%c1_36, %c0_37, %c0_38], %78 {strides = array<i32>} : memref<2x1x256xf32, #tpu.memory_space<vmem>>, vector<1x1x256xf32>,
    return
  }
  func.func @transform_0(%arg0: i32) -> (i32, i32, i32) {
    %c0_i32 = arith.constant 0 : i32
    %c0_i32_0 = arith.constant 0 : i32
    %c0_i32_1 = arith.constant 0 : i32
    return %arg0, %c0_i32, %c0_i32_0 : i32, i32, i32
  }
  func.func @transform_1(%arg0: i32) -> (i32, i32) {
    %c0_i32 = arith.constant 0 : i32
    %c0_i32_0 = arith.constant 0 : i32
    %c0_i32_1 = arith.constant 0 : i32
    return %c0_i32, %c0_i32_0 : i32, i32
  }
  func.func @transform_2(%arg0: i32) -> (i32, i32) {
    %c0_i32 = arith.constant 0 : i32
    %c0_i32_0 = arith.constant 0 : i32
    %c0_i32_1 = arith.constant 0 : i32
    return %c0_i32, %c0_i32_0 : i32, i32
  }
  func.func @transform_3(%arg0: i32) -> (i32, i32) {
    %c0_i32 = arith.constant 0 : i32
    %c0_i32_0 = arith.constant 0 : i32
    %c0_i32_1 = arith.constant 0 : i32
    return %c0_i32, %c0_i32_0 : i32, i32
  }
  func.func @transform_4(%arg0: i32) -> (i32, i32, i32) {
    %c0_i32 = arith.constant 0 : i32
    %c0_i32_0 = arith.constant 0 : i32
    %c0_i32_1 = arith.constant 0 : i32
    return %arg0, %c0_i32, %c0_i32_0 : i32, i32, i32
  }
  func.func @transform_5(%arg0: i32) -> (i32, i32, i32) {
    %c0_i32 = arith.constant 0 : i32
    %c0_i32_0 = arith.constant 0 : i32
    %c0_i32_1 = arith.constant 0 : i32
    return %arg0, %c0_i32, %c0_i32_0 : i32, i32, i32
  }
}

</mosaic_0001>

<llo_original>
// kernel: tpu_custom_call.1
$region0: #{tpu_custom_call.1}
  #allocation0 [shape = 'u32[]', space=smem, size = 0x4, offset = 0x4, fixed_abs, tag = 'smem constant byte address 0x4 - core index']
  #allocation1 [shape = 'u32[144,128]{1,0:T(1,128)}', space=vmem, size = 0x12000, scoped, tag = 'internal scratch']
  %s0 = inlined_call_operand.hbm [shape: f32[4,32,256], index: 0, kind: input, shape index: {}]
  %s1 = inlined_call_operand.vmem [shape: f32[2,32], index: 1, kind: input, shape index: {}]
  %s2 = inlined_call_operand.vmem [shape: f32[32,2], index: 2, kind: input, shape index: {}]
  %s3 = inlined_call_operand.hbm [shape: f32[512,256], index: 3, kind: input, shape index: {}]
  %s4 = inlined_call_operand.hbm [shape: f32[4,32,256], index: 4, kind: output, shape index: {0}]
  %s5 = inlined_call_operand.hbm [shape: f32[4,1,256], index: 5, kind: output, shape index: {1}]
  %6 = xla_tuple %s4, %s5
  %s7 = sld [smem:[#allocation0]]
  $region65: #{tpu_custom_call.1} parent=0
    _
  %s9 = ssub.s32 1, %s7
  %s10 = scalar_select 0, %s9, %s7
  $region1: #{tpu_custom_call.1} parent=0
    #allocation2 [shape = 'u8[131072]{0}', space=vmem, size = 0x20000, scoped, tag = 'input window, operand 0']
    #allocation3 [shape = 's32[2]{0}', space=sflag, size = 0x8, scoped, tag = 'scoped memory for tpu_custom_call.1']
    #allocation4 [shape = 's32[2]{0}', space=sflag, size = 0x8, scoped, tag = 'scoped memory for tpu_custom_call.1']
    #allocation5 [shape = 'u8[524288]{0}', space=vmem, size = 0x80000, scoped, tag = 'input window, operand 3, single buffered']
    #allocation6 [shape = 's32[1]{0}', space=sflag, size = 0x4, scoped, tag = 'scoped memory for tpu_custom_call.1']
    #allocation7 [shape = 'u8[131072]{0}', space=vmem, size = 0x20000, scoped, tag = 'output window, operand 0']
    #allocation8 [shape = 'u8[4096]{0}', space=vmem, size = 0x1000, scoped, tag = 'output window, operand 1']
    #allocation9 [shape = 's32[2]{0}', space=sflag, size = 0x8, scoped, tag = 'scoped memory for tpu_custom_call.1']
    %11 = vsyncpa [#allocation3], 0
    %s12 = scalar_lea.sflag [#allocation3], 1
    %13 = vsyncpa %s12, 0
    %14 = vsyncpa [#allocation6], 0
    %15 = vsyncpa [#allocation4], 0
    %s16 = scalar_lea.sflag [#allocation4], 1
    %17 = vsyncpa %s16, 0
    %18 = vsyncpa [#allocation9], 0
    %s19 = scalar_lea.sflag [#allocation9], 1
    %20 = vsyncpa %s19, 0
    loop: start=0, step=1, limit=4
    $region2: #{tpu_custom_call.1} parent=1 // loop_pre_header
      _
    $region3: #{tpu_custom_call.1} parent=1 // loop_header
      %s22 = sphi 0, %s26
      %p23 = scmp.ge.s32.totalorder %s22, 4
      %s32 = sphi 0, %s34
      %s35 = sphi 0, %s32
      %s36 = sphi 0, %s35
      %s52 = sphi 0, %s36
      %s56 = sphi 0, %s56
      %s58 = sphi 0, %s56
      %s59 = sphi 0, %s58
      %s73 = sphi 0, %s59
      %s77 = sphi 0, %s77
      %s79 = sphi 0, %s77
      %s80 = sphi 0, %s79
      %s94 = sphi 0, %s80
      %s98 = sphi 0, %s98
      %s100 = sphi 0, %s98
      %s101 = sphi 0, %s100
      %s115 = sphi 0, %s101
      %s121 = sphi 0, %s123
      %s124 = sphi 0, %s121
      %s125 = sphi 0, %s124
      %s141 = sphi 0, %s125
      %s147 = sphi 0, %s149
      %s150 = sphi 0, %s147
      %s151 = sphi 0, %s150
      %s167 = sphi 0, %s151
    $region4: #{tpu_custom_call.1} parent=1 // loop_header_branch
      %25 = sbr.rel (%p23) target = $region8
    $region5: #{tpu_custom_call.1} parent=1 // loop_body
      %s27 = ssub.s32 %s22, 1
      %s28 = ssub.s32 %s22, 2
      %s29 = sadd.s32 %s22, 1
      %s30 = ssub.s32 %s22, %s29
      %p31 = scmp.eq.s32.totalorder %s30, 0
      %s33 = sadd.s32 %s32, 1
      %s34 = scalar_select %p31, %s32, %s33
      %p37 = pneg %p31
      %p38 = scmp.eq.s32.totalorder %s22, 1
      %p39 = por %p37, %p38
      %p40 = scmp.ne.s32.totalorder %s32, %s35
      %p41 = scmp.eq.s32.totalorder %s22, 0
      %p42 = por %p40, %p41
      %p43 = scmp.ne.s32.totalorder %s32, %s35
      %p44 = scmp.eq.s32.totalorder %s27, 1
      %p45 = por %p43, %p44
      %p46 = scmp.ne.s32.totalorder %s35, %s36
      %p47 = scmp.eq.s32.totalorder %s27, 0
      %p48 = por %p46, %p47
      %p49 = scmp.ne.s32.totalorder %s35, %s36
      %p50 = scmp.eq.s32.totalorder %s28, 1
      %p51 = por %p49, %p50
      %p53 = scmp.ne.s32.totalorder %s36, %s52
      %p54 = scmp.eq.s32.totalorder %s28, 0
      %p55 = por %p53, %p54
      %s57 = sadd.s32 %s56, 1
      %p60 = scmp.eq.s32.totalorder %s22, 1
      %p61 = scmp.ne.s32.totalorder %s56, %s58
      %p62 = scmp.eq.s32.totalorder %s22, 0
      %p63 = por %p61, %p62
      %p64 = scmp.ne.s32.totalorder %s56, %s58
      %p65 = scmp.eq.s32.totalorder %s27, 1
      %p66 = por %p64, %p65
      %p67 = scmp.ne.s32.totalorder %s58, %s59
      %p68 = scmp.eq.s32.totalorder %s27, 0
      %p69 = por %p67, %p68
      %p70 = scmp.ne.s32.totalorder %s58, %s59
      %p71 = scmp.eq.s32.totalorder %s28, 1
      %p72 = por %p70, %p71
      %p74 = scmp.ne.s32.totalorder %s59, %s73
      %p75 = scmp.eq.s32.totalorder %s28, 0
      %p76 = por %p74, %p75
      %s78 = sadd.s32 %s77, 1
      %p81 = scmp.eq.s32.totalorder %s22, 1
      %p82 = scmp.ne.s32.totalorder %s77, %s79
      %p83 = scmp.eq.s32.totalorder %s22, 0
      %p84 = por %p82, %p83
      %p85 = scmp.ne.s32.totalorder %s77, %s79
      %p86 = scmp.eq.s32.totalorder %s27, 1
      %p87 = por %p85, %p86
      %p88 = scmp.ne.s32.totalorder %s79, %s80
      %p89 = scmp.eq.s32.totalorder %s27, 0
      %p90 = por %p88, %p89
      %p91 = scmp.ne.s32.totalorder %s79, %s80
      %p92 = scmp.eq.s32.totalorder %s28, 1
      %p93 = por %p91, %p92
      %p95 = scmp.ne.s32.totalorder %s80, %s94
      %p96 = scmp.eq.s32.totalorder %s28, 0
      %p97 = por %p95, %p96
      %s99 = sadd.s32 %s98, 1
      %p102 = scmp.eq.s32.totalorder %s22, 1
      %p103 = scmp.ne.s32.totalorder %s98, %s100
      %p104 = scmp.eq.s32.totalorder %s22, 0
      %p105 = por %p103, %p104
      %p106 = scmp.ne.s32.totalorder %s98, %s100
      %p107 = scmp.eq.s32.totalorder %s27, 1
      %p108 = por %p106, %p107
      %p109 = scmp.ne.s32.totalorder %s100, %s101
      %p110 = scmp.eq.s32.totalorder %s27, 0
      %p111 = por %p109, %p110
      %p112 = scmp.ne.s32.totalorder %s100, %s101
      %p113 = scmp.eq.s32.totalorder %s28, 1
      %p114 = por %p112, %p113
      %p116 = scmp.ne.s32.totalorder %s101, %s115
      %p117 = scmp.eq.s32.totalorder %s28, 0
      %p118 = por %p116, %p117
      %s119 = ssub.s32 %s22, %s29
      %p120 = scmp.eq.s32.totalorder %s119, 0
      %s122 = sadd.s32 %s121, 1
      %s123 = scalar_select %p120, %s121, %s122
      %p126 = pneg %p120
      %p127 = scmp.eq.s32.totalorder %s22, 1
      %p128 = por %p126, %p127
      %p129 = scmp.ne.s32.totalorder %s121, %s124
      %p130 = scmp.eq.s32.totalorder %s22, 0
      %p131 = por %p129, %p130
      %p132 = scmp.ne.s32.totalorder %s121, %s124
      %p133 = scmp.eq.s32.totalorder %s27, 1
      %p134 = por %p132, %p133
      %p135 = scmp.ne.s32.totalorder %s124, %s125
      %p136 = scmp.eq.s32.totalorder %s27, 0
      %p137 = por %p135, %p136
      %p138 = scmp.ne.s32.totalorder %s124, %s125
      %p139 = scmp.eq.s32.totalorder %s28, 1
      %p140 = por %p138, %p139
      %p142 = scmp.ne.s32.totalorder %s125, %s141
      %p143 = scmp.eq.s32.totalorder %s28, 0
      %p144 = por %p142, %p143
      %s145 = ssub.s32 %s22, %s29
      %p146 = scmp.eq.s32.totalorder %s145, 0
      %s148 = sadd.s32 %s147, 1
      %s149 = scalar_select %p146, %s147, %s148
      %p152 = pneg %p146
      %p153 = scmp.eq.s32.totalorder %s22, 1
      %p154 = por %p152, %p153
      %p155 = scmp.ne.s32.totalorder %s147, %s150
      %p156 = scmp.eq.s32.totalorder %s22, 0
      %p157 = por %p155, %p156
      %p158 = scmp.ne.s32.totalorder %s147, %s150
      %p159 = scmp.eq.s32.totalorder %s27, 1
      %p160 = por %p158, %p159
      %p161 = scmp.ne.s32.totalorder %s150, %s151
      %p162 = scmp.eq.s32.totalorder %s27, 0
      %p163 = por %p161, %p162
      %p164 = scmp.ne.s32.totalorder %s150, %s151
      %p165 = scmp.eq.s32.totalorder %s28, 1
      %p166 = por %p164, %p165
      %p168 = scmp.ne.s32.totalorder %s151, %s167
      %p169 = scmp.eq.s32.totalorder %s28, 0
      %p170 = por %p168, %p169
      %p171 = scmp.le.s32.totalorder 1, %s22
      %p172 = scmp.lt.s32.totalorder %s22, 3
      %p173 = pnand %p171, %p172
      %p174 = pneg %p173
      // Predicated region
      $region9: #{tpu_custom_call.1} parent=5 // pred_check
        _
      $region10: #{tpu_custom_call.1} parent=5 // pred_check_branch
        %176 = sbr.rel (%p173) target = $region12
      $region11: #{tpu_custom_call.1} parent=5 // pred_region
        %s177 = ssub.s32 %s22, 1
        // Predicated region
        $region13: #{tpu_custom_call.1} parent=11 // pred_check
          %p178 = pneg %p69
        $region14: #{tpu_custom_call.1} parent=11 // pred_check_branch
          %180 = sbr.rel (%p178) target = $region16
        $region15: #{tpu_custom_call.1} parent=11 // pred_region
          _
        $region16: #{tpu_custom_call.1} parent=11 // pred_fallthru
          _
        // Predicated region
        $region17: #{tpu_custom_call.1} parent=11 // pred_check
          %p181 = pneg %p90
        $region18: #{tpu_custom_call.1} parent=11 // pred_check_branch
          %183 = sbr.rel (%p181) target = $region20
        $region19: #{tpu_custom_call.1} parent=11 // pred_region
          _
        $region20: #{tpu_custom_call.1} parent=11 // pred_fallthru
          _
        // Predicated region
        $region21: #{tpu_custom_call.1} parent=11 // pred_check
          %p184 = pneg %p111
        $region22: #{tpu_custom_call.1} parent=11 // pred_check_branch
          %186 = sbr.rel (%p184) target = $region24
        $region23: #{tpu_custom_call.1} parent=11 // pred_region
          %s188 = ssub.s32 16384, 16384
          %189 = vsyncadd [#allocation6], %s188
          %s190 = sshll.u32 [#allocation5], 4
          %s191 = int_to_ptr.vmem [resolvable:$true] %s190
          %196 = dma.hbm_to_vmem [thread:$0]  %s3, 16384, %s191, [#allocation6], 256, 256, 16
        $region24: #{tpu_custom_call.1} parent=11 // pred_fallthru
          _
      $region12: #{tpu_custom_call.1} parent=5 // pred_fallthru
        _
      %p197 = scmp.lt.s32.totalorder %s22, 2
      // Predicated region
      $region25: #{tpu_custom_call.1} parent=5 // pred_check
        %p198 = pneg %p197
      $region26: #{tpu_custom_call.1} parent=5 // pred_check_branch
        %200 = sbr.rel (%p198) target = $region28
      $region27: #{tpu_custom_call.1} parent=5 // pred_region
        // Predicated region
        $region29: #{tpu_custom_call.1} parent=27 // pred_check
          %p201 = pneg %p42
        $region30: #{tpu_custom_call.1} parent=27 // pred_check_branch
          %203 = sbr.rel (%p201) target = $region32
        $region31: #{tpu_custom_call.1} parent=27 // pred_region
          %s204 = sand.u32 %s32, 1
          %s205 = scalar_lea.sflag [#allocation3], %s204
          %s206 = sand.u32 %s32, 1
          %s207 = smul.addr %s206, 128
          %s208 = scalar_lea.vmem [#allocation2], %s207
          %s209 = smul.u32 2, %s22
          %s211 = ssub.s32 2048, 2048
          %212 = vsyncadd %s205, %s211
          %s213 = smul.addr %s209, 8
          %s214 = smul.addr %s213, 128
          %s215 = scalar_lea.hbm %s0, %s214
          %s216 = sshll.u32 %s208, 4
          %s217 = int_to_ptr.vmem [resolvable:$true] %s216
          %222 = dma.hbm_to_vmem [thread:$0]  %s215, 2048, %s217, %s205, 256, 256, 16
        $region32: #{tpu_custom_call.1} parent=27 // pred_fallthru
          _
      $region28: #{tpu_custom_call.1} parent=5 // pred_fallthru
        _
      %p223 = scmp.le.s32.totalorder 1, %s22
      %p224 = scmp.lt.s32.totalorder %s22, 3
      %p225 = pnand %p223, %p224
      %p226 = pneg %p225
      // Predicated region
      $region33: #{tpu_custom_call.1} parent=5 // pred_check
        _
      $region34: #{tpu_custom_call.1} parent=5 // pred_check_branch
        %228 = sbr.rel (%p225) target = $region36
      $region35: #{tpu_custom_call.1} parent=5 // pred_region
        %s229 = ssub.s32 %s22, 1
        %s230 = sand.u32 %s35, 1
        %s231 = scalar_lea.sflag [#allocation3], %s230
        %s232 = sand.u32 %s35, 1
        %s233 = smul.addr %s232, 128
        %s234 = scalar_lea.vmem [#allocation2], %s233
        // Predicated region
        $region37: #{tpu_custom_call.1} parent=35 // pred_check
          %p235 = pneg %p48
        $region38: #{tpu_custom_call.1} parent=35 // pred_check_branch
          %237 = sbr.rel (%p235) target = $region40
        $region39: #{tpu_custom_call.1} parent=35 // pred_region
          %238 = dma.done %s231, 2048
        $region40: #{tpu_custom_call.1} parent=35 // pred_fallthru
          _
        // Predicated region
        $region41: #{tpu_custom_call.1} parent=35 // pred_check
          %p239 = pneg %p111
        $region42: #{tpu_custom_call.1} parent=35 // pred_check_branch
          %241 = sbr.rel (%p239) target = $region44
        $region43: #{tpu_custom_call.1} parent=35 // pred_region
          %242 = dma.done [#allocation6], 16384
        $region44: #{tpu_custom_call.1} parent=35 // pred_fallthru
          _
        %s243 = sand.u32 %s35, 1
        %s244 = scalar_lea.sflag [#allocation3], %s243
        %s245 = sand.u32 %s35, 1
        %s246 = smul.addr %s245, 128
        %s247 = scalar_lea.vmem [#allocation2], %s246
        %p248 = pneg %p48
        %p249 = pneg %p45
        %p250 = pneg %p69
        %p251 = pneg %p66
        %p252 = pneg %p90
        %p253 = pneg %p87
        %p254 = pneg %p111
        %p255 = pneg %p108
        %p256 = pneg %p137
        %p257 = pneg %p134
        %s258 = sand.u32 %s124, 1
        %s259 = scalar_lea.sflag [#allocation4], %s258
        %s260 = sand.u32 %s124, 1
        %s261 = smul.addr %s260, 128
        %s262 = scalar_lea.vmem [#allocation7], %s261
        %p263 = pneg %p163
        %p264 = pneg %p160
        %s265 = sand.u32 %s150, 1
        %s266 = scalar_lea.sflag [#allocation9], %s265
        %s267 = sand.u32 %s150, 1
        %s268 = smul.addr %s267, 4
        %s269 = scalar_lea.vmem [#allocation8], %s268
        %s270 = smul.u32 2, %s27
        %s271 = smul.u32 2, %s27
        %s272 = smul.u32 2, %s27
        %v273 = vld [vmem:[%s234] sm:$0xff]
        %v274 = vld [vmem:[%s234 + $0x8] sm:$0xff]
        %v275 = vld [vmem:[%s234 + $0x10] sm:$0xff]
        %v276 = vld [vmem:[%s234 + $0x18] sm:$0xff]
        %v277 = vld [vmem:[%s234 + $0x20] sm:$0xff]
        %v278 = vld [vmem:[%s234 + $0x28] sm:$0xff]
        %v279 = vld [vmem:[%s234 + $0x30] sm:$0xff]
        %v280 = vld [vmem:[%s234 + $0x38] sm:$0xff]
        %s281 = scalar_lea.vmem %s234, 64 [#allocation2]
        %v282 = vld [vmem:[%s281] sm:$0xff]
        %v283 = vld [vmem:[%s281 + $0x8] sm:$0xff]
        %v284 = vld [vmem:[%s281 + $0x10] sm:$0xff]
        %v285 = vld [vmem:[%s281 + $0x18] sm:$0xff]
        %v286 = vld [vmem:[%s281 + $0x20] sm:$0xff]
        %v287 = vld [vmem:[%s281 + $0x28] sm:$0xff]
        %v288 = vld [vmem:[%s281 + $0x30] sm:$0xff]
        %v289 = vld [vmem:[%s281 + $0x38] sm:$0xff]
        %v290 = vadd.f32 %v273, %v274
        %291 = vadd.xlane.f32.xlu0 %v290
        %v292 = vpop.xlane.xlu0 %291
        %v293 = vadd.f32 %v275, %v276
        %294 = vadd.xlane.f32.xlu0 %v293
        %v295 = vpop.xlane.xlu0 %294
        %v296 = vadd.f32 %v277, %v278
        %297 = vadd.xlane.f32.xlu0 %v296
        %v298 = vpop.xlane.xlu0 %297
        %v299 = vadd.f32 %v279, %v280
        %300 = vadd.xlane.f32.xlu0 %v299
        %v301 = vpop.xlane.xlu0 %300
        %v302 = vmul.f32 %v292, 0.00390625
        %v303 = vmul.f32 %v295, 0.00390625
        %v304 = vmul.f32 %v298, 0.00390625
        %v305 = vmul.f32 %v301, 0.00390625
        %v306 = vadd.f32 %v282, %v283
        %307 = vadd.xlane.f32.xlu0 %v306
        %v308 = vpop.xlane.xlu0 %307
        %v309 = vadd.f32 %v284, %v285
        %310 = vadd.xlane.f32.xlu0 %v309
        %v311 = vpop.xlane.xlu0 %310
        %v312 = vadd.f32 %v286, %v287
        %313 = vadd.xlane.f32.xlu0 %v312
        %v314 = vpop.xlane.xlu0 %313
        %v315 = vadd.f32 %v288, %v289
        %316 = vadd.xlane.f32.xlu0 %v315
        %v317 = vpop.xlane.xlu0 %316
        %v318 = vmul.f32 %v308, 0.00390625
        %v319 = vmul.f32 %v311, 0.00390625
        %v320 = vmul.f32 %v314, 0.00390625
        %v321 = vmul.f32 %v317, 0.00390625
        %v322 = vmax.f32 %v273, %v274
        %323 = vmax.xlane.f32.xlu0 %v322
        %v324 = vpop.xlane.xlu0 %323
        %v325 = vmax.f32 %v275, %v276
        %326 = vmax.xlane.f32.xlu0 %v325
        %v327 = vpop.xlane.xlu0 %326
        %v328 = vmax.f32 %v277, %v278
        %329 = vmax.xlane.f32.xlu0 %v328
        %v330 = vpop.xlane.xlu0 %329
        %v331 = vmax.f32 %v279, %v280
        %332 = vmax.xlane.f32.xlu0 %v331
        %v333 = vpop.xlane.xlu0 %332
        %v334 = vmax.f32 %v282, %v283
        %335 = vmax.xlane.f32.xlu0 %v334
        %v336 = vpop.xlane.xlu0 %335
        %v337 = vmax.f32 %v284, %v285
        %338 = vmax.xlane.f32.xlu0 %v337
        %v339 = vpop.xlane.xlu0 %338
        %v340 = vmax.f32 %v286, %v287
        %341 = vmax.xlane.f32.xlu0 %v340
        %v342 = vpop.xlane.xlu0 %341
        %v343 = vmax.f32 %v288, %v289
        %344 = vmax.xlane.f32.xlu0 %v343
        %v345 = vpop.xlane.xlu0 %344
        %vm346 = vcmask 7168
        %v347 = vsel %vm346, %v302, %v318
        %v348 = vsel %vm346, %v303, %v319
        %v349 = vsel %vm346, %v304, %v320
        %v350 = vsel %vm346, %v305, %v321
        %vm351 = vcmask 15360
        %v352 = vsel %vm351, %v347, %v324
        %v353 = vsel %vm351, %v348, %v327
        %v354 = vsel %vm351, %v349, %v330
        %v355 = vsel %vm351, %v350, %v333
        %vm356 = vcmask 23552
        %v357 = vsel %vm356, %v352, %v336
        %v358 = vsel %vm356, %v353, %v339
        %v359 = vsel %vm356, %v354, %v342
        %v360 = vsel %vm356, %v355, %v345
        %v361 = vld [vmem:[%s1] sm:$0x3]
        %vm362 = vcmask 261120
        %v364 = vsel %vm362, %v361, 0
        %366 = vmatprep.subr.mxu0 0.0
        %367 = vmatpush1.msra.mxu0 0.0
        %368 = vmatprep.subr.mxu0 0.0
        %369 = vmatpush1.msra.mxu0 0.0
        %370 = vmatprep.subr.mxu0 0.0
        %371 = vmatpush1.msra.mxu0 0.0
        %372 = vmatprep.subr.mxu0 0.0
        %373 = vmatpush1.msra.mxu0 0.0
        %374 = vmatprep.subr.mxu0 0.0
        %375 = vmatpush1.msra.mxu0 0.0
        %376 = vmatprep.subr.mxu0 0.0
        %377 = vmatpush1.msra.mxu0 0.0
        %378 = vmatprep.subr.mxu0 0.0
        %379 = vmatpush1.msra.mxu0 0.0
        %380 = vmatprep.subr.mxu0 0.0
        %381 = vmatpush1.msra.mxu0 0.0
        %382 = vmatprep.subr.mxu0 0.0
        %383 = vmatpush1.msra.mxu0 0.0
        %384 = vmatprep.subr.mxu0 0.0
        %385 = vmatpush1.msra.mxu0 0.0
        %386 = vmatprep.subr.mxu0 0.0
        %387 = vmatpush1.msra.mxu0 0.0
        %388 = vmatprep.subr.mxu0 0.0
        %389 = vmatpush1.msra.mxu0 0.0
        %390 = vmatprep.subr.mxu0 0.0
        %391 = vmatpush1.msra.mxu0 %v360
        %392 = vmatprep.subr.mxu0 0.0
        %393 = vmatpush1.msra.mxu0 %v359
        %394 = vmatprep.subr.mxu0 0.0
        %395 = vmatpush1.msra.mxu0 %v358
        %396 = vmatprep.subr.mxu0 0.0
        %397 = vmatpush1.msra.mxu0 %v357
        %398 = vmatprep.subr.mxu0 0.0
        %399 = vmatpush2.msra.mxu0 0.0
        %400 = vmatprep.subr.mxu0 0.0
        %401 = vmatpush2.msra.mxu0 0.0
        %402 = vmatprep.subr.mxu0 0.0
        %403 = vmatpush2.msra.mxu0 0.0
        %404 = vmatprep.subr.mxu0 0.0
        %405 = vmatpush2.msra.mxu0 0.0
        %406 = vmatprep.subr.mxu0 0.0
        %407 = vmatpush2.msra.mxu0 0.0
        %408 = vmatprep.subr.mxu0 0.0
        %409 = vmatpush2.msra.mxu0 0.0
        %410 = vmatprep.subr.mxu0 0.0
        %411 = vmatpush2.msra.mxu0 0.0
        %412 = vmatprep.subr.mxu0 0.0
        %413 = vmatpush2.msra.mxu0 0.0
        %414 = vmatprep.subr.mxu0 0.0
        %415 = vmatpush2.msra.mxu0 0.0
        %416 = vmatprep.subr.mxu0 0.0
        %417 = vmatpush2.msra.mxu0 0.0
        %418 = vmatprep.subr.mxu0 0.0
        %419 = vmatpush2.msra.mxu0 0.0
        %420 = vmatprep.subr.mxu0 0.0
        %421 = vmatpush2.msra.mxu0 0.0
        %422 = vmatprep.subr.mxu0 0.0
        %423 = vmatpush2.msra.mxu0 0.0
        %424 = vmatprep.subr.mxu0 0.0
        %425 = vmatpush2.msra.mxu0 0.0
        %426 = vmatprep.subr.mxu0 0.0
        %427 = vmatpush2.msra.mxu0 0.0
        %428 = vmatprep.subr.mxu0 0.0
        %429 = vmatpush2.msra.mxu0 0.0
        %430 = vmatprep.mubr.f32.mxu0 0.0
        %431 = vmatmul.mubr.f32.gmra.mxu0 %v364
        %v432 = vpop.f32.mrf.mxu0
        %v433 = vadd.f32 0.0, %v432
        %v434 = vpop.f32.mrf.mxu0
        %435 = vdwg.mxu0
        %v436 = vmax.f32 %v433, 0.0
        %v437 = vld [vmem:[%s2] sm:$0xff]
        %v438 = vld [vmem:[%s2 + $0x8] sm:$0xff]
        %v439 = vld [vmem:[%s2 + $0x10] sm:$0xff]
        %v440 = vld [vmem:[%s2 + $0x18] sm:$0xff]
        %442 = vrot.lane.b32.xlu0 %v436, 126
        %v443 = vpop.permute.xlu0 %442
        %v445 = vadd.f32 %v436, %v443
        %v447 = vsel %vm351, %v437, 0
        %v450 = vsel %vm351, %v438, 0
        %v453 = vsel %vm351, %v439, 0
        %v456 = vsel %vm351, %v440, 0
        %vm458 = vcmask 1041408
        %v460 = vsel %vm458, %v445, 0
        %462 = vmatprep.subr.mxu0 0.0
        %463 = vmatpush1.msra.mxu0 0.0
        %464 = vmatprep.subr.mxu0 0.0
        %465 = vmatpush1.msra.mxu0 0.0
        %466 = vmatprep.subr.mxu0 0.0
        %467 = vmatpush1.msra.mxu0 0.0
        %468 = vmatprep.subr.mxu0 0.0
        %469 = vmatpush1.msra.mxu0 0.0
        %470 = vmatprep.subr.mxu0 0.0
        %471 = vmatpush1.msra.mxu0 0.0
        %472 = vmatprep.subr.mxu0 0.0
        %473 = vmatpush1.msra.mxu0 0.0
        %474 = vmatprep.subr.mxu0 0.0
        %475 = vmatpush1.msra.mxu0 0.0
        %476 = vmatprep.subr.mxu0 0.0
        %477 = vmatpush1.msra.mxu0 0.0
        %478 = vmatprep.subr.mxu0 0.0
        %479 = vmatpush1.msra.mxu0 0.0
        %480 = vmatprep.subr.mxu0 0.0
        %481 = vmatpush1.msra.mxu0 0.0
        %482 = vmatprep.subr.mxu0 0.0
        %483 = vmatpush1.msra.mxu0 0.0
        %484 = vmatprep.subr.mxu0 0.0
        %485 = vmatpush1.msra.mxu0 0.0
        %486 = vmatprep.subr.mxu0 0.0
        %487 = vmatpush1.msra.mxu0 0.0
        %488 = vmatprep.subr.mxu0 0.0
        %489 = vmatpush1.msra.mxu0 0.0
        %490 = vmatprep.subr.mxu0 0.0
        %491 = vmatpush1.msra.mxu0 0.0
        %492 = vmatprep.subr.mxu0 0.0
        %493 = vmatpush1.msra.mxu0 %v460
        %494 = vmatprep.subr.mxu0 0.0
        %495 = vmatpush2.msra.mxu0 0.0
        %496 = vmatprep.subr.mxu0 0.0
        %497 = vmatpush2.msra.mxu0 0.0
        %498 = vmatprep.subr.mxu0 0.0
        %499 = vmatpush2.msra.mxu0 0.0
        %500 = vmatprep.subr.mxu0 0.0
        %501 = vmatpush2.msra.mxu0 0.0
        %502 = vmatprep.subr.mxu0 0.0
        %503 = vmatpush2.msra.mxu0 0.0
        %504 = vmatprep.subr.mxu0 0.0
        %505 = vmatpush2.msra.mxu0 0.0
        %506 = vmatprep.subr.mxu0 0.0
        %507 = vmatpush2.msra.mxu0 0.0
        %508 = vmatprep.subr.mxu0 0.0
        %509 = vmatpush2.msra.mxu0 0.0
        %510 = vmatprep.subr.mxu0 0.0
        %511 = vmatpush2.msra.mxu0 0.0
        %512 = vmatprep.subr.mxu0 0.0
        %513 = vmatpush2.msra.mxu0 0.0
        %514 = vmatprep.subr.mxu0 0.0
        %515 = vmatpush2.msra.mxu0 0.0
        %516 = vmatprep.subr.mxu0 0.0
        %517 = vmatpush2.msra.mxu0 0.0
        %518 = vmatprep.subr.mxu0 0.0
        %519 = vmatpush2.msra.mxu0 0.0
        %520 = vmatprep.subr.mxu0 0.0
        %521 = vmatpush2.msra.mxu0 0.0
        %522 = vmatprep.subr.mxu0 0.0
        %523 = vmatpush2.msra.mxu0 0.0
        %524 = vmatprep.subr.mxu0 0.0
        %525 = vmatpush2.msra.mxu0 0.0
        %526 = vmatprep.mubr.f32.mxu0 0.0
        %527 = vmatmul.mubr.f32.gmra.mxu0 %v447
        %v528 = vpop.f32.mrf.mxu0
        %v529 = vadd.f32 0.0, %v528
        %v530 = vpop.f32.mrf.mxu0
        %531 = vmatprep.mubr.f32.mxu0 0.0
        %532 = vmatmul.mubr.f32.gmra.mxu0 %v450
        %v533 = vpop.f32.mrf.mxu0
        %v534 = vadd.f32 0.0, %v533
        %v535 = vpop.f32.mrf.mxu0
        %536 = vmatprep.mubr.f32.mxu0 0.0
        %537 = vmatmul.mubr.f32.gmra.mxu0 %v453
        %v538 = vpop.f32.mrf.mxu0
        %v539 = vadd.f32 0.0, %v538
        %v540 = vpop.f32.mrf.mxu0
        %541 = vmatprep.mubr.f32.mxu0 0.0
        %542 = vmatmul.mubr.f32.gmra.mxu0 %v456
        %v543 = vpop.f32.mrf.mxu0
        %v544 = vadd.f32 0.0, %v543
        %v545 = vpop.f32.mrf.mxu0
        %546 = vdwg.mxu0
        %v547 = vxor.u32 %v529, 2147483648
        %v548 = vxor.u32 %v534, 2147483648
        %v549 = vxor.u32 %v539, 2147483648
        %v550 = vxor.u32 %v544, 2147483648
        %v551 = vmul.f32 %v547, 1.442695
        %v552 = vpow.pop %v551
        %v553 = vmul.f32 %v548, 1.442695
        %v554 = vpow.pop %v553
        %v555 = vmul.f32 %v549, 1.442695
        %v556 = vpow.pop %v555
        %v557 = vmul.f32 %v550, 1.442695
        %v558 = vpow.pop %v557
        %v559 = vadd.f32 %v552, 1.0
        %v560 = vadd.f32 %v554, 1.0
        %v561 = vadd.f32 %v556, 1.0
        %v562 = vadd.f32 %v558, 1.0
        %v563 = vrcp.pop %v559
        %v564 = vmul.f32 1.0, %v563
        %v565 = vrcp.pop %v560
        %v566 = vmul.f32 1.0, %v565
        %v567 = vrcp.pop %v561
        %v568 = vmul.f32 1.0, %v567
        %v569 = vrcp.pop %v562
        %v570 = vmul.f32 1.0, %v569
        %572 = vset.pattern.permute.xlu0 0
        %573 = vperm.xlu0 %572, %v564
        %v574 = vpop.permute.xlu0 %573
        %577 = vset.pattern.permute.xlu0 0
        %578 = vperm.xlu0 %577, %v566
        %v579 = vpop.permute.xlu0 %578
        %582 = vset.pattern.permute.xlu0 0
        %583 = vperm.xlu0 %582, %v568
        %v584 = vpop.permute.xlu0 %583
        %587 = vset.pattern.permute.xlu0 0
        %588 = vperm.xlu0 %587, %v570
        %v589 = vpop.permute.xlu0 %588
        %v591 = vmul.f32 %v273, %v574
        %v592 = vmul.f32 %v274, %v574
        %v593 = vmul.f32 %v275, %v579
        %v594 = vmul.f32 %v276, %v579
        %v595 = vmul.f32 %v277, %v584
        %v596 = vmul.f32 %v278, %v584
        %v597 = vmul.f32 %v279, %v589
        %v598 = vmul.f32 %v280, %v589
        %v599 = vadd.f32 %v591, %v593
        %v600 = vadd.f32 %v599, %v595
        %v601 = vadd.f32 %v600, %v597
        %v602 = vrot.slane %v601, 4
        %v603 = vadd.f32 %v601, %v602
        %v604 = vrot.slane %v603, 2
        %v605 = vadd.f32 %v603, %v604
        %v606 = vrot.slane %v605, 1
        %v607 = vadd.f32 %v605, %v606
        %v608 = vadd.f32 %v592, %v594
        %v609 = vadd.f32 %v608, %v596
        %v610 = vadd.f32 %v609, %v598
        %v611 = vrot.slane %v610, 4
        %v612 = vadd.f32 %v610, %v611
        %v613 = vrot.slane %v612, 2
        %v614 = vadd.f32 %v612, %v613
        %v615 = vrot.slane %v614, 1
        %v616 = vadd.f32 %v614, %v615
        %v617 = vmul.f32 %v607, 0.03125
        %v618 = vmul.f32 %v616, 0.03125
        %v619 = vmax.f32 %v591, %v595
        %v620 = vmax.f32 %v593, %v597
        %v621 = vmax.f32 %v619, %v620
        %v622 = vrot.slane %v621, 4
        %v623 = vmax.f32 %v621, %v622
        %v624 = vrot.slane %v623, 2
        %v625 = vmax.f32 %v623, %v624
        %v626 = vrot.slane %v625, 1
        %v627 = vmax.f32 %v625, %v626
        %v628 = vmax.f32 %v592, %v596
        %v629 = vmax.f32 %v594, %v598
        %v630 = vmax.f32 %v628, %v629
        %v631 = vrot.slane %v630, 4
        %v632 = vmax.f32 %v630, %v631
        %v633 = vrot.slane %v632, 2
        %v634 = vmax.f32 %v632, %v633
        %v635 = vrot.slane %v634, 1
        %v636 = vmax.f32 %v634, %v635
        %637 = vset.pattern.permute.xlu0 1
        %638 = vperm.xlu0 %637, %v564
        %v639 = vpop.permute.xlu0 %638
        %641 = vset.pattern.permute.xlu0 1
        %642 = vperm.xlu0 %641, %v566
        %v643 = vpop.permute.xlu0 %642
        %645 = vset.pattern.permute.xlu0 1
        %646 = vperm.xlu0 %645, %v568
        %v647 = vpop.permute.xlu0 %646
        %649 = vset.pattern.permute.xlu0 1
        %650 = vperm.xlu0 %649, %v570
        %v651 = vpop.permute.xlu0 %650
        %v653 = vmul.f32 %v282, %v639
        %v654 = vmul.f32 %v283, %v639
        %v655 = vmul.f32 %v284, %v643
        %v656 = vmul.f32 %v285, %v643
        %v657 = vmul.f32 %v286, %v647
        %v658 = vmul.f32 %v287, %v647
        %v659 = vmul.f32 %v288, %v651
        %v660 = vmul.f32 %v289, %v651
        %v661 = vadd.f32 %v653, %v655
        %v662 = vadd.f32 %v661, %v657
        %v663 = vadd.f32 %v662, %v659
        %v664 = vrot.slane %v663, 4
        %v665 = vadd.f32 %v663, %v664
        %v666 = vrot.slane %v665, 2
        %v667 = vadd.f32 %v665, %v666
        %v668 = vrot.slane %v667, 1
        %v669 = vadd.f32 %v667, %v668
        %v670 = vadd.f32 %v654, %v656
        %v671 = vadd.f32 %v670, %v658
        %v672 = vadd.f32 %v671, %v660
        %v673 = vrot.slane %v672, 4
        %v674 = vadd.f32 %v672, %v673
        %v675 = vrot.slane %v674, 2
        %v676 = vadd.f32 %v674, %v675
        %v677 = vrot.slane %v676, 1
        %v678 = vadd.f32 %v676, %v677
        %v679 = vmul.f32 %v669, 0.03125
        %v680 = vmul.f32 %v678, 0.03125
        %v681 = vmax.f32 %v653, %v657
        %v682 = vmax.f32 %v655, %v659
        %v683 = vmax.f32 %v681, %v682
        %v684 = vrot.slane %v683, 4
        %v685 = vmax.f32 %v683, %v684
        %v686 = vrot.slane %v685, 2
        %v687 = vmax.f32 %v685, %v686
        %v688 = vrot.slane %v687, 1
        %v689 = vmax.f32 %v687, %v688
        %v690 = vmax.f32 %v654, %v658
        %v691 = vmax.f32 %v656, %v660
        %v692 = vmax.f32 %v690, %v691
        %v693 = vrot.slane %v692, 4
        %v694 = vmax.f32 %v692, %v693
        %v695 = vrot.slane %v694, 2
        %v696 = vmax.f32 %v694, %v695
        %v697 = vrot.slane %v696, 1
        %v698 = vmax.f32 %v696, %v697
        %v703 = vrot.slane %v679, 7
        %v704 = vrot.slane %v680, 7
        %v705 = vrot.slane %v689, 7
        %v706 = vrot.slane %v698, 7
        %vm711 = vcmask 1040384
        %v712 = vsel %vm711, %v617, %v703
        %v713 = vsel %vm711, %v618, %v704
        %v714 = vsel %vm711, %v627, %v705
        %v715 = vsel %vm711, %v636, %v706
        %v716 = vld [vmem:[#allocation5] sm:$0xff]
        %v717 = vld [vmem:[#allocation5 + $0x8] sm:$0xff]
        %v718 = vld [vmem:[#allocation5 + $0x10] sm:$0xff]
        %v719 = vld [vmem:[#allocation5 + $0x18] sm:$0xff]
        %v720 = vld [vmem:[#allocation5 + $0x20] sm:$0xff]
        %v721 = vld [vmem:[#allocation5 + $0x28] sm:$0xff]
        %v722 = vld [vmem:[#allocation5 + $0x30] sm:$0xff]
        %v723 = vld [vmem:[#allocation5 + $0x38] sm:$0xff]
        %v724 = vld [vmem:[#allocation5 + $0x40] sm:$0xff]
        %v725 = vld [vmem:[#allocation5 + $0x48] sm:$0xff]
        %v726 = vld [vmem:[#allocation5 + $0x50] sm:$0xff]
        %v727 = vld [vmem:[#allocation5 + $0x58] sm:$0xff]
        %v728 = vld [vmem:[#allocation5 + $0x60] sm:$0xff]
        %v729 = vld [vmem:[#allocation5 + $0x68] sm:$0xff]
        %v730 = vld [vmem:[#allocation5 + $0x70] sm:$0xff]
        %v731 = vld [vmem:[#allocation5 + $0x78] sm:$0xff]
        %v732 = vld [vmem:[#allocation5 + $0x80] sm:$0xff]
        %v733 = vld [vmem:[#allocation5 + $0x88] sm:$0xff]
        %v734 = vld [vmem:[#allocation5 + $0x90] sm:$0xff]
        %v735 = vld [vmem:[#allocation5 + $0x98] sm:$0xff]
        %v736 = vld [vmem:[#allocation5 + $0xa0] sm:$0xff]
        %v737 = vld [vmem:[#allocation5 + $0xa8] sm:$0xff]
        %v738 = vld [vmem:[#allocation5 + $0xb0] sm:$0xff]
        %v739 = vld [vmem:[#allocation5 + $0xb8] sm:$0xff]
        %v740 = vld [vmem:[#allocation5 + $0xc0] sm:$0xff]
        %v741 = vld [vmem:[#allocation5 + $0xc8] sm:$0xff]
        %v742 = vld [vmem:[#allocation5 + $0xd0] sm:$0xff]
        %v743 = vld [vmem:[#allocation5 + $0xd8] sm:$0xff]
        %v744 = vld [vmem:[#allocation5 + $0xe0] sm:$0xff]
        %v745 = vld [vmem:[#allocation5 + $0xe8] sm:$0xff]
        %v746 = vld [vmem:[#allocation5 + $0xf0] sm:$0xff]
        %v747 = vld [vmem:[#allocation5 + $0xf8] sm:$0xff]
        %v748 = vld [vmem:[#allocation5 + $0x100] sm:$0xff]
        %v749 = vld [vmem:[#allocation5 + $0x108] sm:$0xff]
        %v750 = vld [vmem:[#allocation5 + $0x110] sm:$0xff]
        %v751 = vld [vmem:[#allocation5 + $0x118] sm:$0xff]
        %v752 = vld [vmem:[#allocation5 + $0x120] sm:$0xff]
        %v753 = vld [vmem:[#allocation5 + $0x128] sm:$0xff]
        %v754 = vld [vmem:[#allocation5 + $0x130] sm:$0xff]
        %v755 = vld [vmem:[#allocation5 + $0x138] sm:$0xff]
        %v756 = vld [vmem:[#allocation5 + $0x140] sm:$0xff]
        %v757 = vld [vmem:[#allocation5 + $0x148] sm:$0xff]
        %v758 = vld [vmem:[#allocation5 + $0x150] sm:$0xff]
        %v759 = vld [vmem:[#allocation5 + $0x158] sm:$0xff]
        %v760 = vld [vmem:[#allocation5 + $0x160] sm:$0xff]
        %v761 = vld [vmem:[#allocation5 + $0x168] sm:$0xff]
        %v762 = vld [vmem:[#allocation5 + $0x170] sm:$0xff]
        %v763 = vld [vmem:[#allocation5 + $0x178] sm:$0xff]
        %v764 = vld [vmem:[#allocation5 + $0x180] sm:$0xff]
        %v765 = vld [vmem:[#allocation5 + $0x188] sm:$0xff]
        %v766 = vld [vmem:[#allocation5 + $0x190] sm:$0xff]
        %v767 = vld [vmem:[#allocation5 + $0x198] sm:$0xff]
        %v768 = vld [vmem:[#allocation5 + $0x1a0] sm:$0xff]
        %v769 = vld [vmem:[#allocation5 + $0x1a8] sm:$0xff]
        %v770 = vld [vmem:[#allocation5 + $0x1b0] sm:$0xff]
        %v771 = vld [vmem:[#allocation5 + $0x1b8] sm:$0xff]
        %v772 = vld [vmem:[#allocation5 + $0x1c0] sm:$0xff]
        %v773 = vld [vmem:[#allocation5 + $0x1c8] sm:$0xff]
        %v774 = vld [vmem:[#allocation5 + $0x1d0] sm:$0xff]
        %v775 = vld [vmem:[#allocation5 + $0x1d8] sm:$0xff]
        %v776 = vld [vmem:[#allocation5 + $0x1e0] sm:$0xff]
        %v777 = vld [vmem:[#allocation5 + $0x1e8] sm:$0xff]
        %v778 = vld [vmem:[#allocation5 + $0x1f0] sm:$0xff]
        %v779 = vld [vmem:[#allocation5 + $0x1f8] sm:$0xff]
        %v780 = vld [vmem:[#allocation5 + $0x200] sm:$0xff]
        %v781 = vld [vmem:[#allocation5 + $0x208] sm:$0xff]
        %v782 = vld [vmem:[#allocation5 + $0x210] sm:$0xff]
        %v783 = vld [vmem:[#allocation5 + $0x218] sm:$0xff]
        %v784 = vld [vmem:[#allocation5 + $0x220] sm:$0xff]
        %v785 = vld [vmem:[#allocation5 + $0x228] sm:$0xff]
        %v786 = vld [vmem:[#allocation5 + $0x230] sm:$0xff]
        %v787 = vld [vmem:[#allocation5 + $0x238] sm:$0xff]
        %v788 = vld [vmem:[#allocation5 + $0x240] sm:$0xff]
        %v789 = vld [vmem:[#allocation5 + $0x248] sm:$0xff]
        %v790 = vld [vmem:[#allocation5 + $0x250] sm:$0xff]
        %v791 = vld [vmem:[#allocation5 + $0x258] sm:$0xff]
        %v792 = vld [vmem:[#allocation5 + $0x260] sm:$0xff]
        %v793 = vld [vmem:[#allocation5 + $0x268] sm:$0xff]
        %v794 = vld [vmem:[#allocation5 + $0x270] sm:$0xff]
        %v795 = vld [vmem:[#allocation5 + $0x278] sm:$0xff]
        %v796 = vld [vmem:[#allocation5 + $0x280] sm:$0xff]
        %v797 = vld [vmem:[#allocation5 + $0x288] sm:$0xff]
        %v798 = vld [vmem:[#allocation5 + $0x290] sm:$0xff]
        %v799 = vld [vmem:[#allocation5 + $0x298] sm:$0xff]
        %v800 = vld [vmem:[#allocation5 + $0x2a0] sm:$0xff]
        %v801 = vld [vmem:[#allocation5 + $0x2a8] sm:$0xff]
        %v802 = vld [vmem:[#allocation5 + $0x2b0] sm:$0xff]
        %v803 = vld [vmem:[#allocation5 + $0x2b8] sm:$0xff]
        %v804 = vld [vmem:[#allocation5 + $0x2c0] sm:$0xff]
        %v805 = vld [vmem:[#allocation5 + $0x2c8] sm:$0xff]
        %v806 = vld [vmem:[#allocation5 + $0x2d0] sm:$0xff]
        %v807 = vld [vmem:[#allocation5 + $0x2d8] sm:$0xff]
        %v808 = vld [vmem:[#allocation5 + $0x2e0] sm:$0xff]
        %v809 = vld [vmem:[#allocation5 + $0x2e8] sm:$0xff]
        %v810 = vld [vmem:[#allocation5 + $0x2f0] sm:$0xff]
        %v811 = vld [vmem:[#allocation5 + $0x2f8] sm:$0xff]
        %v812 = vld [vmem:[#allocation5 + $0x300] sm:$0xff]
        %v813 = vld [vmem:[#allocation5 + $0x308] sm:$0xff]
        %v814 = vld [vmem:[#allocation5 + $0x310] sm:$0xff]
        %v815 = vld [vmem:[#allocation5 + $0x318] sm:$0xff]
        %v816 = vld [vmem:[#allocation5 + $0x320] sm:$0xff]
        %v817 = vld [vmem:[#allocation5 + $0x328] sm:$0xff]
        %v818 = vld [vmem:[#allocation5 + $0x330] sm:$0xff]
        %v819 = vld [vmem:[#allocation5 + $0x338] sm:$0xff]
        %v820 = vld [vmem:[#allocation5 + $0x340] sm:$0xff]
        %v821 = vld [vmem:[#allocation5 + $0x348] sm:$0xff]
        %v822 = vld [vmem:[#allocation5 + $0x350] sm:$0xff]
        %v823 = vld [vmem:[#allocation5 + $0x358] sm:$0xff]
        %v824 = vld [vmem:[#allocation5 + $0x360] sm:$0xff]
        %v825 = vld [vmem:[#allocation5 + $0x368] sm:$0xff]
        %v826 = vld [vmem:[#allocation5 + $0x370] sm:$0xff]
        %v827 = vld [vmem:[#allocation5 + $0x378] sm:$0xff]
        %v828 = vld [vmem:[#allocation5 + $0x380] sm:$0xff]
        %v829 = vld [vmem:[#allocation5 + $0x388] sm:$0xff]
        %v830 = vld [vmem:[#allocation5 + $0x390] sm:$0xff]
        %v831 = vld [vmem:[#allocation5 + $0x398] sm:$0xff]
        %v832 = vld [vmem:[#allocation5 + $0x3a0] sm:$0xff]
        %v833 = vld [vmem:[#allocation5 + $0x3a8] sm:$0xff]
        %v834 = vld [vmem:[#allocation5 + $0x3b0] sm:$0xff]
        %v835 = vld [vmem:[#allocation5 + $0x3b8] sm:$0xff]
        %v836 = vld [vmem:[#allocation5 + $0x3c0] sm:$0xff]
        %v837 = vld [vmem:[#allocation5 + $0x3c8] sm:$0xff]
        %v838 = vld [vmem:[#allocation5 + $0x3d0] sm:$0xff]
        %v839 = vld [vmem:[#allocation5 + $0x3d8] sm:$0xff]
        %v840 = vld [vmem:[#allocation5 + $0x3e0] sm:$0xff]
        %v841 = vld [vmem:[#allocation5 + $0x3e8] sm:$0xff]
        %v842 = vld [vmem:[#allocation5 + $0x3f0] sm:$0xff]
        %v843 = vld [vmem:[#allocation5 + $0x3f8] sm:$0xff]
        %844 = vmatprep.subr.mxu0 %v747
        %845 = vmatpush1.msra.mxu0 %v746
        %846 = vmatprep.subr.mxu0 %v745
        %847 = vmatpush1.msra.mxu0 %v744
        %848 = vmatprep.subr.mxu0 %v743
        %849 = vmatpush1.msra.mxu0 %v742
        %850 = vmatprep.subr.mxu0 %v741
        %851 = vmatpush1.msra.mxu0 %v740
        %852 = vmatprep.subr.mxu0 %v739
        %853 = vmatpush1.msra.mxu0 %v738
        %854 = vmatprep.subr.mxu0 %v737
        %855 = vmatpush1.msra.mxu0 %v736
        %856 = vmatprep.subr.mxu0 %v735
        %857 = vmatpush1.msra.mxu0 %v734
        %858 = vmatprep.subr.mxu0 %v733
        %859 = vmatpush1.msra.mxu0 %v732
        %860 = vmatprep.subr.mxu0 %v731
        %861 = vmatpush1.msra.mxu0 %v730
        %862 = vmatprep.subr.mxu0 %v729
        %863 = vmatpush1.msra.mxu0 %v728
        %864 = vmatprep.subr.mxu0 %v727
        %865 = vmatpush1.msra.mxu0 %v726
        %866 = vmatprep.subr.mxu0 %v725
        %867 = vmatpush1.msra.mxu0 %v724
        %868 = vmatprep.subr.mxu0 %v723
        %869 = vmatpush1.msra.mxu0 %v722
        %870 = vmatprep.subr.mxu0 %v721
        %871 = vmatpush1.msra.mxu0 %v720
        %872 = vmatprep.subr.mxu0 %v719
        %873 = vmatpush1.msra.mxu0 %v718
        %874 = vmatprep.subr.mxu0 %v717
        %875 = vmatpush1.msra.mxu0 %v716
        %876 = vmatprep.subr.mxu0 %v779
        %877 = vmatpush2.msra.mxu0 %v778
        %878 = vmatprep.subr.mxu0 %v777
        %879 = vmatpush2.msra.mxu0 %v776
        %880 = vmatprep.subr.mxu0 %v775
        %881 = vmatpush2.msra.mxu0 %v774
        %882 = vmatprep.subr.mxu0 %v773
        %883 = vmatpush2.msra.mxu0 %v772
        %884 = vmatprep.subr.mxu0 %v771
        %885 = vmatpush2.msra.mxu0 %v770
        %886 = vmatprep.subr.mxu0 %v769
        %887 = vmatpush2.msra.mxu0 %v768
        %888 = vmatprep.subr.mxu0 %v767
        %889 = vmatpush2.msra.mxu0 %v766
        %890 = vmatprep.subr.mxu0 %v765
        %891 = vmatpush2.msra.mxu0 %v764
        %892 = vmatprep.subr.mxu0 %v763
        %893 = vmatpush2.msra.mxu0 %v762
        %894 = vmatprep.subr.mxu0 %v761
        %895 = vmatpush2.msra.mxu0 %v760
        %896 = vmatprep.subr.mxu0 %v759
        %897 = vmatpush2.msra.mxu0 %v758
        %898 = vmatprep.subr.mxu0 %v757
        %899 = vmatpush2.msra.mxu0 %v756
        %900 = vmatprep.subr.mxu0 %v755
        %901 = vmatpush2.msra.mxu0 %v754
        %902 = vmatprep.subr.mxu0 %v753
        %903 = vmatpush2.msra.mxu0 %v752
        %904 = vmatprep.subr.mxu0 %v751
        %905 = vmatpush2.msra.mxu0 %v750
        %906 = vmatprep.subr.mxu0 %v749
        %907 = vmatpush2.msra.mxu0 %v748
        %908 = vmatprep.mubr.f32.mxu0 %v713
        %909 = vmatmul.mubr.f32.gmra.mxu0 %v712
        %v910 = vpop.f32.mrf.mxu0
        %v911 = vadd.f32 0.0, %v910
        %v912 = vpop.f32.mrf.mxu0
        %v913 = vadd.f32 0.0, %v912
        %914 = vdwg.mxu0
        %915 = vmatprep.subr.mxu0 %v811
        %916 = vmatpush1.msra.mxu0 %v810
        %917 = vmatprep.subr.mxu0 %v809
        %918 = vmatpush1.msra.mxu0 %v808
        %919 = vmatprep.subr.mxu0 %v807
        %920 = vmatpush1.msra.mxu0 %v806
        %921 = vmatprep.subr.mxu0 %v805
        %922 = vmatpush1.msra.mxu0 %v804
        %923 = vmatprep.subr.mxu0 %v803
        %924 = vmatpush1.msra.mxu0 %v802
        %925 = vmatprep.subr.mxu0 %v801
        %926 = vmatpush1.msra.mxu0 %v800
        %927 = vmatprep.subr.mxu0 %v799
        %928 = vmatpush1.msra.mxu0 %v798
        %929 = vmatprep.subr.mxu0 %v797
        %930 = vmatpush1.msra.mxu0 %v796
        %931 = vmatprep.subr.mxu0 %v795
        %932 = vmatpush1.msra.mxu0 %v794
        %933 = vmatprep.subr.mxu0 %v793
        %934 = vmatpush1.msra.mxu0 %v792
        %935 = vmatprep.subr.mxu0 %v791
        %936 = vmatpush1.msra.mxu0 %v790
        %937 = vmatprep.subr.mxu0 %v789
        %938 = vmatpush1.msra.mxu0 %v788
        %939 = vmatprep.subr.mxu0 %v787
        %940 = vmatpush1.msra.mxu0 %v786
        %941 = vmatprep.subr.mxu0 %v785
        %942 = vmatpush1.msra.mxu0 %v784
        %943 = vmatprep.subr.mxu0 %v783
        %944 = vmatpush1.msra.mxu0 %v782
        %945 = vmatprep.subr.mxu0 %v781
        %946 = vmatpush1.msra.mxu0 %v780
        %947 = vmatprep.subr.mxu0 %v843
        %948 = vmatpush2.msra.mxu0 %v842
        %949 = vmatprep.subr.mxu0 %v841
        %950 = vmatpush2.msra.mxu0 %v840
        %951 = vmatprep.subr.mxu0 %v839
        %952 = vmatpush2.msra.mxu0 %v838
        %953 = vmatprep.subr.mxu0 %v837
        %954 = vmatpush2.msra.mxu0 %v836
        %955 = vmatprep.subr.mxu0 %v835
        %956 = vmatpush2.msra.mxu0 %v834
        %957 = vmatprep.subr.mxu0 %v833
        %958 = vmatpush2.msra.mxu0 %v832
        %959 = vmatprep.subr.mxu0 %v831
        %960 = vmatpush2.msra.mxu0 %v830
        %961 = vmatprep.subr.mxu0 %v829
        %962 = vmatpush2.msra.mxu0 %v828
        %963 = vmatprep.subr.mxu0 %v827
        %964 = vmatpush2.msra.mxu0 %v826
        %965 = vmatprep.subr.mxu0 %v825
        %966 = vmatpush2.msra.mxu0 %v824
        %967 = vmatprep.subr.mxu0 %v823
        %968 = vmatpush2.msra.mxu0 %v822
        %969 = vmatprep.subr.mxu0 %v821
        %970 = vmatpush2.msra.mxu0 %v820
        %971 = vmatprep.subr.mxu0 %v819
        %972 = vmatpush2.msra.mxu0 %v818
        %973 = vmatprep.subr.mxu0 %v817
        %974 = vmatpush2.msra.mxu0 %v816
        %975 = vmatprep.subr.mxu0 %v815
        %976 = vmatpush2.msra.mxu0 %v814
        %977 = vmatprep.subr.mxu0 %v813
        %978 = vmatpush2.msra.mxu0 %v812
        %979 = vmatprep.mubr.f32.mxu0 %v715
        %980 = vmatmul.mubr.f32.gmra.mxu0 %v714
        %v981 = vpop.f32.mrf.mxu0
        %v982 = vadd.f32 %v911, %v981
        %v983 = vpop.f32.mrf.mxu0
        %v984 = vadd.f32 %v913, %v983
        %985 = vdwg.mxu0
        %v986 = vxor.u32 %v982, 2147483648
        %v987 = vxor.u32 %v984, 2147483648
        %v988 = vmul.f32 %v986, 1.442695
        %v989 = vpow.pop %v988
        %v990 = vmul.f32 %v987, 1.442695
        %v991 = vpow.pop %v990
        %v992 = vadd.f32 %v989, 1.0
        %v993 = vadd.f32 %v991, 1.0
        %v994 = vrcp.pop %v992
        %v995 = vmul.f32 1.0, %v994
        %v996 = vrcp.pop %v993
        %v997 = vmul.f32 1.0, %v996
        %v998 = vlaneseq
        %v999 = vshrl.u32 %v998, 7
        %v1000 = vsub.s32 0, %v999
        %v1001 = vrot.slane %v995, %v1000
        %v1002 = vlaneseq
        %v1003 = vshrl.u32 %v1002, 7
        %v1004 = vsub.s32 0, %v1003
        %v1005 = vrot.slane %v997, %v1004
        %v1006 = vmul.f32 %v591, %v1001
        %v1007 = vmul.f32 %v592, %v1005
        %v1008 = vmul.f32 %v593, %v1001
        %v1009 = vmul.f32 %v594, %v1005
        %v1010 = vmul.f32 %v595, %v1001
        %v1011 = vmul.f32 %v596, %v1005
        %v1012 = vmul.f32 %v597, %v1001
        %v1013 = vmul.f32 %v598, %v1005
        %1014 = vst [vmem:[%s262] sm:$0xff] %v1006
        %1015 = vst [vmem:[%s262 + $0x8] sm:$0xff] %v1007
        %1016 = vst [vmem:[%s262 + $0x10] sm:$0xff] %v1008
        %1017 = vst [vmem:[%s262 + $0x18] sm:$0xff] %v1009
        %1018 = vst [vmem:[%s262 + $0x20] sm:$0xff] %v1010
        %1019 = vst [vmem:[%s262 + $0x28] sm:$0xff] %v1011
        %1020 = vst [vmem:[%s262 + $0x30] sm:$0xff] %v1012
        %1021 = vst [vmem:[%s262 + $0x38] sm:$0xff] %v1013
        %v1024 = vcombine.low %v995, %v997
        %v1026 = vunpack.c.l.s4 1966171168
        %v1027 = vunpack.c.0.s8 %v1026
        %v1028 = vlaneseq
        %v1029 = vshrl.u32 %v1028, 7
        %v1030 = vsub.s32 %v1027, %v1029
        %v1031 = vrot.slane %v1024, %v1030
        %v1033 = vunpack.c.l.s4 1966171168
        %v1034 = vunpack.c.0.s8 %v1033
        %v1035 = vlaneseq
        %v1036 = vshrl.u32 %v1035, 7
        %v1037 = vsub.s32 %v1034, %v1036
        %v1038 = vrot.slane %v1031, %v1037
        %v1040 = vlaneseq
        %vm1041 = vcmp.ge.s32.totalorder %v1040, 0
        %vm1042 = vcmp.lt.s32.totalorder %v1040, 256
        %vm1043 = vmand %vm1041, %vm1042
        %1044 = vst.msk [vmem:[%s269] sm:$0x3] %vm1043, %v1038
        %v1045 = vlaneseq
        %v1046 = vshrl.u32 %v1045, 7
        %v1047 = vsub.s32 1, %v1046
        %v1048 = vrot.slane %v995, %v1047
        %v1049 = vlaneseq
        %v1050 = vshrl.u32 %v1049, 7
        %v1051 = vsub.s32 1, %v1050
        %v1052 = vrot.slane %v997, %v1051
        %v1053 = vmul.f32 %v653, %v1048
        %v1054 = vmul.f32 %v654, %v1052
        %v1055 = vmul.f32 %v655, %v1048
        %v1056 = vmul.f32 %v656, %v1052
        %v1057 = vmul.f32 %v657, %v1048
        %v1058 = vmul.f32 %v658, %v1052
        %v1059 = vmul.f32 %v659, %v1048
        %v1060 = vmul.f32 %v660, %v1052
        %s1061 = scalar_lea.vmem %s262, 64 [#allocation7]
        %1062 = vst [vmem:[%s1061] sm:$0xff] %v1053
        %1063 = vst [vmem:[%s1061 + $0x8] sm:$0xff] %v1054
        %1064 = vst [vmem:[%s1061 + $0x10] sm:$0xff] %v1055
        %1065 = vst [vmem:[%s1061 + $0x18] sm:$0xff] %v1056
        %1066 = vst [vmem:[%s1061 + $0x20] sm:$0xff] %v1057
        %1067 = vst [vmem:[%s1061 + $0x28] sm:$0xff] %v1058
        %1068 = vst [vmem:[%s1061 + $0x30] sm:$0xff] %v1059
        %1069 = vst [vmem:[%s1061 + $0x38] sm:$0xff] %v1060
        %v1070 = vcombine.high %v1031, %v1031
        %v1072 = vunpack.c.l.s4 1966171168
        %v1073 = vunpack.c.0.s8 %v1072
        %v1074 = vlaneseq
        %v1075 = vshrl.u32 %v1074, 7
        %v1076 = vsub.s32 %v1073, %v1075
        %v1077 = vrot.slane %v1070, %v1076
        %s1079 = scalar_lea.vmem %s269, 2 [#allocation8]
        %1080 = vst.msk [vmem:[%s1079] sm:$0x3] %vm1043, %v1077
        %s1081 = sand.u32 %s124, 1
        %s1082 = scalar_lea.sflag [#allocation4], %s1081
        %s1083 = sand.u32 %s124, 1
        %s1084 = smul.addr %s1083, 128
        %s1085 = scalar_lea.vmem [#allocation7], %s1084
        %s1086 = sand.u32 %s150, 1
        %s1087 = scalar_lea.sflag [#allocation9], %s1086
        %s1088 = sand.u32 %s150, 1
        %s1089 = smul.addr %s1088, 4
        %s1090 = scalar_lea.vmem [#allocation8], %s1089
        // Predicated region
        $region45: #{tpu_custom_call.1} parent=35 // pred_check
          %p1091 = pneg %p134
        $region46: #{tpu_custom_call.1} parent=35 // pred_check_branch
          %1093 = sbr.rel (%p1091) target = $region48
        $region47: #{tpu_custom_call.1} parent=35 // pred_region
          %s1094 = smul.u32 2, %s27
          %s1096 = ssub.s32 2048, 2048
          %1097 = vsyncadd %s1082, %s1096
          %s1098 = smul.addr %s1094, 8
          %s1099 = smul.addr %s1098, 128
          %s1100 = scalar_lea.hbm %s4, %s1099
          %s1101 = sshll.u32 %s1085, 4
          %s1102 = int_to_ptr.vmem [resolvable:$true] %s1101
          %1107 = dma.vmem_to_hbm [thread:$0]  %s1102, 2048, %s1100, %s1082, 256, 256, 16
        $region48: #{tpu_custom_call.1} parent=35 // pred_fallthru
          _
        // Predicated region
        $region49: #{tpu_custom_call.1} parent=35 // pred_check
          %p1108 = pneg %p160
        $region50: #{tpu_custom_call.1} parent=35 // pred_check_branch
          %1110 = sbr.rel (%p1108) target = $region52
        $region51: #{tpu_custom_call.1} parent=35 // pred_region
          %s1111 = smul.u32 2, %s27
          %s1113 = ssub.s32 64, 64
          %1114 = vsyncadd %s1087, %s1113
          %s1115 = smul.addr %s1111, 2
          %s1116 = smul.addr %s1115, 16
          %s1117 = scalar_lea.hbm %s5, %s1116
          %s1118 = sshll.u32 %s1090, 4
          %s1119 = int_to_ptr.vmem [resolvable:$true] %s1118
          %1124 = dma.vmem_to_hbm [thread:$0]  %s1119, 64, %s1117, %s1087, 32, 32, 2
        $region52: #{tpu_custom_call.1} parent=35 // pred_fallthru
          _
      $region36: #{tpu_custom_call.1} parent=5 // pred_fallthru
        _
      %p1125 = scmp.le.s32.totalorder 2, %s22
      // Predicated region
      $region53: #{tpu_custom_call.1} parent=5 // pred_check
        %p1126 = pneg %p1125
      $region54: #{tpu_custom_call.1} parent=5 // pred_check_branch
        %1128 = sbr.rel (%p1126) target = $region56
      $region55: #{tpu_custom_call.1} parent=5 // pred_region
        %s1129 = ssub.s32 %s22, 2
        // Predicated region
        $region57: #{tpu_custom_call.1} parent=55 // pred_check
          %p1130 = pneg %p140
        $region58: #{tpu_custom_call.1} parent=55 // pred_check_branch
          %1132 = sbr.rel (%p1130) target = $region60
        $region59: #{tpu_custom_call.1} parent=55 // pred_region
          %s1133 = sand.u32 %s125, 1
          %s1134 = scalar_lea.sflag [#allocation4], %s1133
          %s1135 = sand.u32 %s125, 1
          %s1136 = smul.addr %s1135, 128
          %s1137 = scalar_lea.vmem [#allocation7], %s1136
          %1138 = dma.done %s1134, 2048
        $region60: #{tpu_custom_call.1} parent=55 // pred_fallthru
          _
        // Predicated region
        $region61: #{tpu_custom_call.1} parent=55 // pred_check
          %p1139 = pneg %p166
        $region62: #{tpu_custom_call.1} parent=55 // pred_check_branch
          %1141 = sbr.rel (%p1139) target = $region64
        $region63: #{tpu_custom_call.1} parent=55 // pred_region
          %s1142 = sand.u32 %s151, 1
          %s1143 = scalar_lea.sflag [#allocation9], %s1142
          %s1144 = sand.u32 %s151, 1
          %s1145 = smul.addr %s1144, 4
          %s1146 = scalar_lea.vmem [#allocation8], %s1145
          %1147 = dma.done %s1143, 64
        $region64: #{tpu_custom_call.1} parent=55 // pred_fallthru
          _
      $region56: #{tpu_custom_call.1} parent=5 // pred_fallthru
        _
    $region6: #{tpu_custom_call.1} parent=1 // loop_footer
      %s26 = sadd.s32 1, %s22
    $region7: #{tpu_custom_call.1} parent=1 // loop_footer_branch
      %21 = sbr.rel target = $region3
    $region8: #{tpu_custom_call.1} parent=1 // loop_exit
      _
    %1148 = vsyncpa [#allocation3], 1
    %s1149 = scalar_lea.sflag [#allocation3], 1
    %1150 = vsyncpa %s1149, 1
    %1151 = vsyncpa [#allocation6], 1
    %1152 = vsyncpa [#allocation4], 1
    %s1153 = scalar_lea.sflag [#allocation4], 1
    %1154 = vsyncpa %s1153, 1
    %1155 = vsyncpa [#allocation9], 1
    %s1156 = scalar_lea.sflag [#allocation9], 1
    %1157 = vsyncpa %s1156, 1

</llo_original>
